<compile_context>
chip_gen: v5e
topology: v5e:2x2
jax: 0.10.0
libtpu: 0.0.40
codegen_flags: <defaults>
</compile_context>

<pallas_src>
import functools

import jax
import jax.numpy as jnp
from jax.experimental import pallas as pl
from jax.experimental.pallas import tpu as pltpu


def _round_up(x, m):
    return (x + m - 1) // m * m


def _auto_tile_b(batch):
    """Pick the batch tile: 1 grid step on v5e/v6e, 2-way split on v7x."""
    try:
        kind = jax.devices()[0].device_kind.lower()
        n_tc = 2 if "v7" in kind else 1  # v7x has 2 TensorCores per chip
    except Exception:  # pragma: no cover - defensive
        n_tc = 1
    if batch <= 8:
        return batch
    per_core = pl.cdiv(batch, n_tc)
    return min(_round_up(per_core, 8), 1024)


def _mlp_kernel(n_layers, x_ref, *refs):
    """refs = (w1, b1, w2, b2, ..., wn, bn, out_ref).

    x_ref:   (tile_b, d0)       f32
    w_i:     (d_i, d_{i+1})     bf16 (pre-transposed vs torch: (in, out))
    b_i:     (1, d_{i+1})       f32
    out_ref: (tile_b, d_n)      f32
    """
    out_ref = refs[-1]
    param_refs = refs[:-1]

    h = x_ref[...]
    for i in range(n_layers):
        w = param_refs[2 * i][...]        # bf16 (d_in, d_out)
        b = param_refs[2 * i + 1][...]    # f32  (1, d_out) -> broadcasts
        # bf16 MXU inputs, f32 accumulation; bias add in f32.
        h = jnp.dot(h.astype(jnp.bfloat16), w,
                    preferred_element_type=jnp.float32) + b
        if i < n_layers - 1:
            h = jnp.tanh(h)               # nn.Tanh
        else:
            # nn.Softmax(dim=-1), numerically stable.  No lane masking needed:
            # the logical last dim is exactly d_n (compiler masks internally).
            m = jnp.max(h, axis=-1, keepdims=True)
            e = jnp.exp(h - m)
            denom = jnp.sum(e, axis=-1, keepdims=True)
            r = pl.reciprocal(denom, approx=True)   # EUP vrcp
            r = r * (2.0 - denom * r)               # one Newton step
            h = e * r
    out_ref[...] = h.astype(out_ref.dtype)


def prepare_params(weights, biases):
    """One-time parameter prep (hoisted out of the hot path).

    weights[i]: (hidden_size[i], hidden_size[i+1])  (already (in, out))
    biases[i]:  (hidden_size[i+1],)
    Returns (tuple of bf16 weights, tuple of f32 (1, d_out) biases).
    """
    ws = tuple(jnp.asarray(w, jnp.bfloat16) for w in weights)
    bs = tuple(jnp.asarray(b, jnp.float32).reshape(1, -1) for b in biases)
    return ws, bs


def mlp_forward(x, params, *, tile_b=None):
    """x: (B, hidden_size[0]) float32; params from prepare_params.
    Returns (B, hidden_size[-1]) float32 softmax probabilities."""
    ws, bs = params
    n_layers = len(ws)
    batch, in_dim = x.shape
    assert ws[0].shape[0] == in_dim
    out_dim = ws[-1].shape[1]

    if tile_b is None:
        tile_b = _auto_tile_b(batch)
    grid = (pl.cdiv(batch, tile_b),)

    # x / out are batch-blocked; weights & biases use full-array blocks with a
    # constant index_map, so they stay VMEM-resident across all grid steps.
    in_specs = [pl.BlockSpec((tile_b, in_dim), lambda i: (i, 0))]
    flat_params = []
    for w, b in zip(ws, bs):
        in_specs.append(pl.BlockSpec(w.shape, lambda i: (0, 0)))
        in_specs.append(pl.BlockSpec(b.shape, lambda i: (0, 0)))
        flat_params += [w, b]
    out_specs = pl.BlockSpec((tile_b, out_dim), lambda i: (i, 0))

    kernel = functools.partial(_mlp_kernel, n_layers)

    return pl.pallas_call(
        kernel,
        out_shape=jax.ShapeDtypeStruct((batch, out_dim), jnp.float32),
        grid=grid,
        in_specs=in_specs,
        out_specs=out_specs,
        compiler_params=pltpu.CompilerParams(
            dimension_semantics=("parallel",)),
    )(x, *flat_params)


def init_params(key, hidden_size):
    """Deterministic init mimicking torch.nn.Linear defaults (uniform +-1/sqrt(fan_in))."""
    weights, biases = [], []
    for i in range(len(hidden_size) - 1):
        fan_in, fan_out = hidden_size[i], hidden_size[i + 1]
        key, kw, kb = jax.random.split(key, 3)
        bound = 1.0 / jnp.sqrt(jnp.float32(fan_in))
        # Stored as (in, out); torch stores (out, in) and transposes in forward.
        w = jax.random.uniform(kw, (fan_in, fan_out), jnp.float32, -bound, bound)
        b = jax.random.uniform(kb, (fan_out,), jnp.float32, -bound, bound)
        weights.append(w)
        biases.append(b)
    return weights, biases


def reference_forward(x, weights, biases):
    """Pure-JAX f32 reference of the torch module's forward."""
    h = x
    n = len(weights)
    for i, (w, b) in enumerate(zip(weights, biases)):
        h = h @ w + b
        if i < n - 1:
            h = jnp.tanh(h)
        else:
            h = jax.nn.softmax(h, axis=-1)
    return h


if __name__ == "__main__":
    # Net(hidden_size=[32, 64, 48, 16]): lin1+tanh1, lin2+tanh2, lin3+softmax.
    hidden_size = [32, 64, 48, 16]
    batch = 256

    key = jax.random.PRNGKey(0)
    key, kx = jax.random.split(key)
    x = jax.random.normal(kx, (batch, hidden_size[0]), jnp.float32)
    weights, biases = init_params(key, hidden_size)

    # One-time parameter prep (outside the hot path), then a jitted forward.
    params = prepare_params(weights, biases)
    fwd = jax.jit(mlp_forward)

    out = fwd(x, params)
    out = jax.block_until_ready(out)

    ref = reference_forward(x, weights, biases)
    assert out.shape == (batch, hidden_size[-1])
    # bf16 matmul inputs (f32 accumulate) -> compare at a bf16-appropriate tol.
    assert jnp.allclose(out, ref, atol=2e-3, rtol=2e-3), "mismatch vs reference"
    # rows of a softmax must sum to 1 (Newton-refined reciprocal keeps this tight)
    assert jnp.allclose(jnp.sum(out, axis=-1), jnp.ones((batch,)), atol=1e-4)

    print("KERNEL_OK")
</pallas_src>

<mosaic_0001>
module attributes {stable_mosaic.version = 11 : i64} {
  func.func @_mlp_kernel(%arg0: i32, %arg1: memref<256x32xf32, #tpu.memory_space<vmem>>, %arg2: memref<32x64xbf16, #tpu.memory_space<vmem>>, %arg3: memref<1x64xf32, #tpu.memory_space<vmem>>, %arg4: memref<64x48xbf16, #tpu.memory_space<vmem>>, %arg5: memref<1x48xf32, #tpu.memory_space<vmem>>, %arg6: memref<48x16xbf16, #tpu.memory_space<vmem>>, %arg7: memref<1x16xf32, #tpu.memory_space<vmem>>, %arg8: memref<256x16xf32, #tpu.memory_space<vmem>>) attributes {dimension_semantics = [#tpu.dimension_semantics<parallel>], iteration_bounds = array<i64: 1>, scalar_prefetch = 0 : i64, scratch_operands = 0 : i64, tpu.core_type = #tpu.core_type<tc>, window_params = [{transform_indices = @transform_0, window_bounds = array<i64: 256, 32>}, {pipeline_mode = #tpu.pipeline_mode<synchronous>, transform_indices = @transform_1, window_bounds = array<i64: 32, 64>}, {pipeline_mode = #tpu.pipeline_mode<synchronous>, transform_indices = @transform_2, window_bounds = array<i64: 1, 64>}, {pipeline_mode = #tpu.pipeline_mode<synchronous>, transform_indices = @transform_3, window_bounds = array<i64: 64, 48>}, {pipeline_mode = #tpu.pipeline_mode<synchronous>, transform_indices = @transform_4, window_bounds = array<i64: 1, 48>}, {pipeline_mode = #tpu.pipeline_mode<synchronous>, transform_indices = @transform_5, window_bounds = array<i64: 48, 16>}, {pipeline_mode = #tpu.pipeline_mode<synchronous>, transform_indices = @transform_6, window_bounds = array<i64: 1, 16>}, {transform_indices = @transform_7, window_bounds = array<i64: 256, 16>}]} {
    %c0 = arith.constant 0 : index
    %c0_0 = arith.constant 0 : index
    %0 = vector.load %arg1[%c0, %c0_0] : memref<256x32xf32, #tpu.memory_space<vmem>>, vector<256x32xf32>
    %c0_1 = arith.constant 0 : index
    %c0_2 = arith.constant 0 : index
    %1 = vector.load %arg2[%c0_1, %c0_2] : memref<32x64xbf16, #tpu.memory_space<vmem>>, vector<32x64xbf16>
    %c0_3 = arith.constant 0 : index
    %c0_4 = arith.constant 0 : index
    %2 = vector.load %arg3[%c0_3, %c0_4] : memref<1x64xf32, #tpu.memory_space<vmem>>, vector<1x64xf32>
    %3 = arith.truncf %0 : vector<256x32xf32> to vector<256x32xbf16>
    %cst = arith.constant dense<0.000000e+00> : vector<256x64xf32>
    %4 = tpu.matmul %3, %1, %cst {dimension_numbers = #tpu.dot_dimension_numbers<[1], [0], [0], [1], [0, 0, 1, 1], [], []>} : vector<256x32xbf16>, vector<32x64xbf16>, vector<256x64xf32> -> vector<256x64xf32>
    %5 = vector.broadcast %2 : vector<1x64xf32> to vector<256x64xf32>
    %6 = arith.addf %4, %5 : vector<256x64xf32>
    %7 = math.tanh %6 : vector<256x64xf32>
    %c0_5 = arith.constant 0 : index
    %c0_6 = arith.constant 0 : index
    %8 = vector.load %arg4[%c0_5, %c0_6] : memref<64x48xbf16, #tpu.memory_space<vmem>>, vector<64x48xbf16>
    %c0_7 = arith.constant 0 : index
    %c0_8 = arith.constant 0 : index
    %9 = vector.load %arg5[%c0_7, %c0_8] : memref<1x48xf32, #tpu.memory_space<vmem>>, vector<1x48xf32>
    %10 = arith.truncf %7 : vector<256x64xf32> to vector<256x64xbf16>
    %cst_9 = arith.constant dense<0.000000e+00> : vector<256x48xf32>
    %11 = tpu.matmul %10, %8, %cst_9 {dimension_numbers = #tpu.dot_dimension_numbers<[1], [0], [0], [1], [0, 0, 1, 1], [], []>} : vector<256x64xbf16>, vector<64x48xbf16>, vector<256x48xf32> -> vector<256x48xf32>
    %12 = vector.broadcast %9 : vector<1x48xf32> to vector<256x48xf32>
    %13 = arith.addf %11, %12 : vector<256x48xf32>
    %14 = math.tanh %13 : vector<256x48xf32>
    %c0_10 = arith.constant 0 : index
    %c0_11 = arith.constant 0 : index
    %15 = vector.load %arg6[%c0_10, %c0_11] : memref<48x16xbf16, #tpu.memory_space<vmem>>, vector<48x16xbf16>
    %c0_12 = arith.constant 0 : index
    %c0_13 = arith.constant 0 : index
    %16 = vector.load %arg7[%c0_12, %c0_13] : memref<1x16xf32, #tpu.memory_space<vmem>>, vector<1x16xf32>
    %17 = arith.truncf %14 : vector<256x48xf32> to vector<256x48xbf16>
    %cst_14 = arith.constant dense<0.000000e+00> : vector<256x16xf32>
    %18 = tpu.matmul %17, %15, %cst_14 {dimension_numbers = #tpu.dot_dimension_numbers<[1], [0], [0], [1], [0, 0, 1, 1], [], []>} : vector<256x48xbf16>, vector<48x16xbf16>, vector<256x16xf32> -> vector<256x16xf32>
    %19 = vector.broadcast %16 : vector<1x16xf32> to vector<256x16xf32>
    %20 = arith.addf %18, %19 : vector<256x16xf32>
    %cst_15 = arith.constant dense<0xFF800000> : vector<256xf32>
    %21 = vector.multi_reduction <maximumf>, %20, %cst_15 [1] : vector<256x16xf32> to vector<256xf32>
    %22 = vector.shape_cast %21 : vector<256xf32> to vector<256x1xf32>
    %23 = vector.broadcast %22 : vector<256x1xf32> to vector<256x16xf32>
    %24 = arith.subf %20, %23 : vector<256x16xf32>
    %25 = math.exp %24 : vector<256x16xf32>
    %cst_16 = arith.constant dense<0.000000e+00> : vector<256xf32>
    %26 = vector.multi_reduction <add>, %25, %cst_16 [1] : vector<256x16xf32> to vector<256xf32>
    %27 = vector.shape_cast %26 : vector<256xf32> to vector<256x1xf32>
    %28 = tpu.reciprocal %27 {approx = true} : vector<256x1xf32> -> vector<256x1xf32>
    %29 = arith.mulf %27, %28 : vector<256x1xf32>
    %cst_17 = arith.constant 2.000000e+00 : f32
    %30 = vector.broadcast %cst_17 : f32 to vector<256x1xf32>
    %31 = arith.subf %30, %29 : vector<256x1xf32>
    %32 = arith.mulf %28, %31 : vector<256x1xf32>
    %33 = vector.broadcast %32 : vector<256x1xf32> to vector<256x16xf32>
    %34 = arith.mulf %25, %33 : vector<256x16xf32>
    %c0_18 = arith.constant 0 : index
    %c0_19 = arith.constant 0 : index
    %35 = vector.load %arg8[%c0_18, %c0_19] : memref<256x16xf32, #tpu.memory_space<vmem>>, vector<256x16xf32>
    tpu.vector_store %arg8[%c0_18, %c0_19], %34 {strides = array<i32>} : memref<256x16xf32, #tpu.memory_space<vmem>>, vector<256x16xf32>,
    return
  }
  func.func @transform_0(%arg0: i32) -> (i32, i32) {
    %c0_i32 = arith.constant 0 : i32
    %c0_i32_0 = arith.constant 0 : i32
    return %arg0, %c0_i32 : i32, i32
  }
  func.func @transform_1(%arg0: i32) -> (i32, i32) {
    %c0_i32 = arith.constant 0 : i32
    %c0_i32_0 = arith.constant 0 : i32
    %c0_i32_1 = arith.constant 0 : i32
    return %c0_i32, %c0_i32_0 : i32, i32
  }
  func.func @transform_2(%arg0: i32) -> (i32, i32) {
    %c0_i32 = arith.constant 0 : i32
    %c0_i32_0 = arith.constant 0 : i32
    %c0_i32_1 = arith.constant 0 : i32
    return %c0_i32, %c0_i32_0 : i32, i32
  }
  func.func @transform_3(%arg0: i32) -> (i32, i32) {
    %c0_i32 = arith.constant 0 : i32
    %c0_i32_0 = arith.constant 0 : i32
    %c0_i32_1 = arith.constant 0 : i32
    return %c0_i32, %c0_i32_0 : i32, i32
  }
  func.func @transform_4(%arg0: i32) -> (i32, i32) {
    %c0_i32 = arith.constant 0 : i32
    %c0_i32_0 = arith.constant 0 : i32
    %c0_i32_1 = arith.constant 0 : i32
    return %c0_i32, %c0_i32_0 : i32, i32
  }
  func.func @transform_5(%arg0: i32) -> (i32, i32) {
    %c0_i32 = arith.constant 0 : i32
    %c0_i32_0 = arith.constant 0 : i32
    %c0_i32_1 = arith.constant 0 : i32
    return %c0_i32, %c0_i32_0 : i32, i32
  }
  func.func @transform_6(%arg0: i32) -> (i32, i32) {
    %c0_i32 = arith.constant 0 : i32
    %c0_i32_0 = arith.constant 0 : i32
    %c0_i32_1 = arith.constant 0 : i32
    return %c0_i32, %c0_i32_0 : i32, i32
  }
  func.func @transform_7(%arg0: i32) -> (i32, i32) {
    %c0_i32 = arith.constant 0 : i32
    %c0_i32_0 = arith.constant 0 : i32
    return %arg0, %c0_i32 : i32, i32
  }
}

</mosaic_0001>

<llo_original>
// kernel: mlp_forward.1
$region0: #{mlp_forward.1}
  #allocation0 [shape = 'u32[]', space=smem, size = 0x4, offset = 0x4, fixed_abs, tag = 'smem constant byte address 0x4 - core index']
  #allocation1 [shape = 'u32[72,128]{1,0:T(1,128)}', space=vmem, size = 0x9000, scoped, tag = 'internal scratch']
  %s0 = inlined_call_operand.vmem [shape: f32[256,32], index: 0, kind: input, shape index: {}]
  %s1 = inlined_call_operand.vmem [shape: bf16[32,64], index: 1, kind: input, shape index: {}]
  %s2 = inlined_call_operand.vmem [shape: f32[1,64], index: 2, kind: input, shape index: {}]
  %s3 = inlined_call_operand.vmem [shape: bf16[64,48], index: 3, kind: input, shape index: {}]
  %s4 = inlined_call_operand.vmem [shape: f32[1,48], index: 4, kind: input, shape index: {}]
  %s5 = inlined_call_operand.vmem [shape: bf16[48,16], index: 5, kind: input, shape index: {}]
  %s6 = inlined_call_operand.vmem [shape: f32[1,16], index: 6, kind: input, shape index: {}]
  %s7 = inlined_call_operand.vmem [shape: f32[256,16], index: 7, kind: output, shape index: {}]
  %s8 = sld [smem:[#allocation0]]
  $region38: #{mlp_forward.1} parent=0
    _
  %s10 = ssub.s32 1, %s8
  %s11 = scalar_select 0, %s10, %s8
  // Predicated region
  $region2: #{mlp_forward.1} parent=0 // pred_check
    _
  $region3: #{mlp_forward.1} parent=0 // pred_check_branch
    %13 = sbr.rel (0) target = $region5
  $region4: #{mlp_forward.1} parent=0 // pred_region
    _
  $region5: #{mlp_forward.1} parent=0 // pred_fallthru
    _
  // Predicated region
  $region6: #{mlp_forward.1} parent=0 // pred_check
    _
  $region7: #{mlp_forward.1} parent=0 // pred_check_branch
    %15 = sbr.rel (0) target = $region9
  $region8: #{mlp_forward.1} parent=0 // pred_region
    _
  $region9: #{mlp_forward.1} parent=0 // pred_fallthru
    _
  // Predicated region
  $region10: #{mlp_forward.1} parent=0 // pred_check
    _
  $region11: #{mlp_forward.1} parent=0 // pred_check_branch
    %17 = sbr.rel (0) target = $region13
  $region12: #{mlp_forward.1} parent=0 // pred_region
    _
  $region13: #{mlp_forward.1} parent=0 // pred_fallthru
    _
  // Predicated region
  $region14: #{mlp_forward.1} parent=0 // pred_check
    _
  $region15: #{mlp_forward.1} parent=0 // pred_check_branch
    %19 = sbr.rel (0) target = $region17
  $region16: #{mlp_forward.1} parent=0 // pred_region
    _
  $region17: #{mlp_forward.1} parent=0 // pred_fallthru
    _
  // Predicated region
  $region18: #{mlp_forward.1} parent=0 // pred_check
    _
  $region19: #{mlp_forward.1} parent=0 // pred_check_branch
    %21 = sbr.rel (0) target = $region21
  $region20: #{mlp_forward.1} parent=0 // pred_region
    _
  $region21: #{mlp_forward.1} parent=0 // pred_fallthru
    _
  // Predicated region
  $region22: #{mlp_forward.1} parent=0 // pred_check
    _
  $region23: #{mlp_forward.1} parent=0 // pred_check_branch
    %23 = sbr.rel (0) target = $region25
  $region24: #{mlp_forward.1} parent=0 // pred_region
    _
  $region25: #{mlp_forward.1} parent=0 // pred_fallthru
    _
  // Predicated region
  $region26: #{mlp_forward.1} parent=0 // pred_check
    _
  $region27: #{mlp_forward.1} parent=0 // pred_check_branch
    %25 = sbr.rel (0) target = $region29
  $region28: #{mlp_forward.1} parent=0 // pred_region
    _
  $region29: #{mlp_forward.1} parent=0 // pred_fallthru
    _
  %v27 = vld [vmem:[%s0] sm:$0xff]
  %v28 = vld [vmem:[%s0 + $0x8] sm:$0xff]
  %v29 = vld [vmem:[%s0 + $0x10] sm:$0xff]
  %v30 = vld [vmem:[%s0 + $0x18] sm:$0xff]
  %v31 = vld [vmem:[%s0 + $0x20] sm:$0xff]
  %v32 = vld [vmem:[%s0 + $0x28] sm:$0xff]
  %v33 = vld [vmem:[%s0 + $0x30] sm:$0xff]
  %v34 = vld [vmem:[%s0 + $0x38] sm:$0xff]
  %v35 = vld [vmem:[%s0 + $0x40] sm:$0xff]
  %v36 = vld [vmem:[%s0 + $0x48] sm:$0xff]
  %v37 = vld [vmem:[%s0 + $0x50] sm:$0xff]
  %v38 = vld [vmem:[%s0 + $0x58] sm:$0xff]
  %v39 = vld [vmem:[%s0 + $0x60] sm:$0xff]
  %v40 = vld [vmem:[%s0 + $0x68] sm:$0xff]
  %v41 = vld [vmem:[%s0 + $0x70] sm:$0xff]
  %v42 = vld [vmem:[%s0 + $0x78] sm:$0xff]
  %v43 = vld [vmem:[%s0 + $0x80] sm:$0xff]
  %v44 = vld [vmem:[%s0 + $0x88] sm:$0xff]
  %v45 = vld [vmem:[%s0 + $0x90] sm:$0xff]
  %v46 = vld [vmem:[%s0 + $0x98] sm:$0xff]
  %v47 = vld [vmem:[%s0 + $0xa0] sm:$0xff]
  %v48 = vld [vmem:[%s0 + $0xa8] sm:$0xff]
  %v49 = vld [vmem:[%s0 + $0xb0] sm:$0xff]
  %v50 = vld [vmem:[%s0 + $0xb8] sm:$0xff]
  %v51 = vld [vmem:[%s0 + $0xc0] sm:$0xff]
  %v52 = vld [vmem:[%s0 + $0xc8] sm:$0xff]
  %v53 = vld [vmem:[%s0 + $0xd0] sm:$0xff]
  %v54 = vld [vmem:[%s0 + $0xd8] sm:$0xff]
  %v55 = vld [vmem:[%s0 + $0xe0] sm:$0xff]
  %v56 = vld [vmem:[%s0 + $0xe8] sm:$0xff]
  %v57 = vld [vmem:[%s0 + $0xf0] sm:$0xff]
  %v58 = vld [vmem:[%s0 + $0xf8] sm:$0xff]
  %v59 = vld [vmem:[%s1] sm:$0xf]
  %v60 = vld [vmem:[%s1 + $0x4] sm:$0xf]
  %v61 = vld [vmem:[%s1 + $0x8] sm:$0xf]
  %v62 = vld [vmem:[%s1 + $0xc] sm:$0xf]
  %v63 = vld [vmem:[%s2] sm:$0x1]
  %v64 = vpack.c.bf16 %v28, %v27
  %v65 = vpack.c.bf16 %v30, %v29
  %v66 = vpack.c.bf16 %v32, %v31
  %v67 = vpack.c.bf16 %v34, %v33
  %v68 = vpack.c.bf16 %v36, %v35
  %v69 = vpack.c.bf16 %v38, %v37
  %v70 = vpack.c.bf16 %v40, %v39
  %v71 = vpack.c.bf16 %v42, %v41
  %v72 = vpack.c.bf16 %v44, %v43
  %v73 = vpack.c.bf16 %v46, %v45
  %v74 = vpack.c.bf16 %v48, %v47
  %v75 = vpack.c.bf16 %v50, %v49
  %v76 = vpack.c.bf16 %v52, %v51
  %v77 = vpack.c.bf16 %v54, %v53
  %v78 = vpack.c.bf16 %v56, %v55
  %v79 = vpack.c.bf16 %v58, %v57
  %v81 = vperm.slane %v63, 0
  %v87 = vunpack.c.l.b16 %v59
  %v88 = vunpack.c.l.b16 %v60
  %v89 = vunpack.c.l.b16 %v61
  %v90 = vunpack.c.l.b16 %v62
  %v91 = vpack.c.b16 %v88, %v87
  %v92 = vpack.c.b16 %v90, %v89
  %vm95 = vcmask 261120
  %v97 = vsel %vm95, %v64, 0
  %v100 = vsel %vm95, %v65, 0
  %v103 = vsel %vm95, %v66, 0
  %v106 = vsel %vm95, %v67, 0
  %v109 = vsel %vm95, %v68, 0
  %v112 = vsel %vm95, %v69, 0
  %v115 = vsel %vm95, %v70, 0
  %v118 = vsel %vm95, %v71, 0
  %v121 = vsel %vm95, %v72, 0
  %v124 = vsel %vm95, %v73, 0
  %v127 = vsel %vm95, %v74, 0
  %v130 = vsel %vm95, %v75, 0
  %v133 = vsel %vm95, %v76, 0
  %v136 = vsel %vm95, %v77, 0
  %v139 = vsel %vm95, %v78, 0
  %v142 = vsel %vm95, %v79, 0
  %144 = vmatpush.bf16.msra.mxu0 0
  %145 = vmatpush.bf16.msra.mxu0 0
  %146 = vmatpush.bf16.msra.mxu0 0
  %147 = vmatpush.bf16.msra.mxu0 0
  %148 = vmatpush.bf16.msra.mxu0 0
  %149 = vmatpush.bf16.msra.mxu0 0
  %150 = vmatpush.bf16.msra.mxu0 %v92
  %151 = vmatpush.bf16.msra.mxu0 %v91
  %152 = vmatmul.bf16.gmra.mxu0 %v97
  %v153 = vpop.f32.mrf.mxu0
  %v154 = vadd.f32 %v81, %v153
  %v155 = vpop.f32.mrf.mxu0
  %v156 = vadd.f32 %v81, %v155
  %157 = vmatmul.bf16.gmra.mxu0 %v100
  %v158 = vpop.f32.mrf.mxu0
  %v159 = vadd.f32 %v81, %v158
  %v160 = vpop.f32.mrf.mxu0
  %v161 = vadd.f32 %v81, %v160
  %162 = vmatmul.bf16.gmra.mxu0 %v103
  %v163 = vpop.f32.mrf.mxu0
  %v164 = vadd.f32 %v81, %v163
  %v165 = vpop.f32.mrf.mxu0
  %v166 = vadd.f32 %v81, %v165
  %167 = vmatmul.bf16.gmra.mxu0 %v106
  %v168 = vpop.f32.mrf.mxu0
  %v169 = vadd.f32 %v81, %v168
  %v170 = vpop.f32.mrf.mxu0
  %v171 = vadd.f32 %v81, %v170
  %172 = vmatmul.bf16.gmra.mxu0 %v109
  %v173 = vpop.f32.mrf.mxu0
  %v174 = vadd.f32 %v81, %v173
  %v175 = vpop.f32.mrf.mxu0
  %v176 = vadd.f32 %v81, %v175
  %177 = vmatmul.bf16.gmra.mxu0 %v112
  %v178 = vpop.f32.mrf.mxu0
  %v179 = vadd.f32 %v81, %v178
  %v180 = vpop.f32.mrf.mxu0
  %v181 = vadd.f32 %v81, %v180
  %182 = vmatmul.bf16.gmra.mxu0 %v115
  %v183 = vpop.f32.mrf.mxu0
  %v184 = vadd.f32 %v81, %v183
  %v185 = vpop.f32.mrf.mxu0
  %v186 = vadd.f32 %v81, %v185
  %187 = vmatmul.bf16.gmra.mxu0 %v118
  %v188 = vpop.f32.mrf.mxu0
  %v189 = vadd.f32 %v81, %v188
  %v190 = vpop.f32.mrf.mxu0
  %v191 = vadd.f32 %v81, %v190
  %192 = vmatmul.bf16.gmra.mxu0 %v121
  %v193 = vpop.f32.mrf.mxu0
  %v194 = vadd.f32 %v81, %v193
  %v195 = vpop.f32.mrf.mxu0
  %v196 = vadd.f32 %v81, %v195
  %197 = vmatmul.bf16.gmra.mxu0 %v124
  %v198 = vpop.f32.mrf.mxu0
  %v199 = vadd.f32 %v81, %v198
  %v200 = vpop.f32.mrf.mxu0
  %v201 = vadd.f32 %v81, %v200
  %202 = vmatmul.bf16.gmra.mxu0 %v127
  %v203 = vpop.f32.mrf.mxu0
  %v204 = vadd.f32 %v81, %v203
  %v205 = vpop.f32.mrf.mxu0
  %v206 = vadd.f32 %v81, %v205
  %207 = vmatmul.bf16.gmra.mxu0 %v130
  %v208 = vpop.f32.mrf.mxu0
  %v209 = vadd.f32 %v81, %v208
  %v210 = vpop.f32.mrf.mxu0
  %v211 = vadd.f32 %v81, %v210
  %212 = vmatmul.bf16.gmra.mxu0 %v133
  %v213 = vpop.f32.mrf.mxu0
  %v214 = vadd.f32 %v81, %v213
  %v215 = vpop.f32.mrf.mxu0
  %v216 = vadd.f32 %v81, %v215
  %217 = vmatmul.bf16.gmra.mxu0 %v136
  %v218 = vpop.f32.mrf.mxu0
  %v219 = vadd.f32 %v81, %v218
  %v220 = vpop.f32.mrf.mxu0
  %v221 = vadd.f32 %v81, %v220
  %222 = vmatmul.bf16.gmra.mxu0 %v139
  %v223 = vpop.f32.mrf.mxu0
  %v224 = vadd.f32 %v81, %v223
  %v225 = vpop.f32.mrf.mxu0
  %v226 = vadd.f32 %v81, %v225
  %227 = vmatmul.bf16.gmra.mxu0 %v142
  %v228 = vpop.f32.mrf.mxu0
  %v229 = vadd.f32 %v81, %v228
  %v230 = vpop.f32.mrf.mxu0
  %v231 = vadd.f32 %v81, %v230
  %232 = vdwg.mxu0
  %v233 = vtanh.pop %v154
  %v234 = vtanh.pop %v156
  %v235 = vtanh.pop %v159
  %v236 = vtanh.pop %v161
  %v237 = vtanh.pop %v164
  %v238 = vtanh.pop %v166
  %v239 = vtanh.pop %v169
  %v240 = vtanh.pop %v171
  %v241 = vtanh.pop %v174
  %v242 = vtanh.pop %v176
  %v243 = vtanh.pop %v179
  %v244 = vtanh.pop %v181
  %v245 = vtanh.pop %v184
  %v246 = vtanh.pop %v186
  %v247 = vtanh.pop %v189
  %v248 = vtanh.pop %v191
  %v249 = vtanh.pop %v194
  %v250 = vtanh.pop %v196
  %v251 = vtanh.pop %v199
  %v252 = vtanh.pop %v201
  %v253 = vtanh.pop %v204
  %v254 = vtanh.pop %v206
  %v255 = vtanh.pop %v209
  %v256 = vtanh.pop %v211
  %v257 = vtanh.pop %v214
  %v258 = vtanh.pop %v216
  %v259 = vtanh.pop %v219
  %v260 = vtanh.pop %v221
  %v261 = vtanh.pop %v224
  %v262 = vtanh.pop %v226
  %v263 = vtanh.pop %v229
  %v264 = vtanh.pop %v231
  %v265 = vld [vmem:[%s3] sm:$0xf]
  %v266 = vld [vmem:[%s3 + $0x4] sm:$0xf]
  %v267 = vld [vmem:[%s3 + $0x8] sm:$0xf]
  %v268 = vld [vmem:[%s3 + $0xc] sm:$0xf]
  %v269 = vld [vmem:[%s3 + $0x10] sm:$0xf]
  %v270 = vld [vmem:[%s3 + $0x14] sm:$0xf]
  %v271 = vld [vmem:[%s3 + $0x18] sm:$0xf]
  %v272 = vld [vmem:[%s3 + $0x1c] sm:$0xf]
  %v273 = vld [vmem:[%s4] sm:$0x1]
  %v274 = vpack.c.bf16 %v234, %v233
  %v275 = vpack.c.bf16 %v236, %v235
  %v276 = vpack.c.bf16 %v238, %v237
  %v277 = vpack.c.bf16 %v240, %v239
  %v278 = vpack.c.bf16 %v242, %v241
  %v279 = vpack.c.bf16 %v244, %v243
  %v280 = vpack.c.bf16 %v246, %v245
  %v281 = vpack.c.bf16 %v248, %v247
  %v282 = vpack.c.bf16 %v250, %v249
  %v283 = vpack.c.bf16 %v252, %v251
  %v284 = vpack.c.bf16 %v254, %v253
  %v285 = vpack.c.bf16 %v256, %v255
  %v286 = vpack.c.bf16 %v258, %v257
  %v287 = vpack.c.bf16 %v260, %v259
  %v288 = vpack.c.bf16 %v262, %v261
  %v289 = vpack.c.bf16 %v264, %v263
  %v291 = vperm.slane %v273, 0
  %v301 = vunpack.c.l.b16 %v265
  %v302 = vunpack.c.l.b16 %v266
  %v303 = vunpack.c.l.b16 %v267
  %v304 = vunpack.c.l.b16 %v268
  %v305 = vunpack.c.l.b16 %v269
  %v306 = vunpack.c.l.b16 %v270
  %v307 = vunpack.c.l.b16 %v271
  %v308 = vunpack.c.l.b16 %v272
  %v309 = vpack.c.b16 %v302, %v301
  %v310 = vpack.c.b16 %v304, %v303
  %v311 = vpack.c.b16 %v306, %v305
  %v312 = vpack.c.b16 %v308, %v307
  %vm317 = vcmask 523264
  %v319 = vsel %vm317, %v274, 0
  %v322 = vsel %vm317, %v275, 0
  %v325 = vsel %vm317, %v276, 0
  %v328 = vsel %vm317, %v277, 0
  %v331 = vsel %vm317, %v278, 0
  %v334 = vsel %vm317, %v279, 0
  %v337 = vsel %vm317, %v280, 0
  %v340 = vsel %vm317, %v281, 0
  %v343 = vsel %vm317, %v282, 0
  %v346 = vsel %vm317, %v283, 0
  %v349 = vsel %vm317, %v284, 0
  %v352 = vsel %vm317, %v285, 0
  %v355 = vsel %vm317, %v286, 0
  %v358 = vsel %vm317, %v287, 0
  %v361 = vsel %vm317, %v288, 0
  %v364 = vsel %vm317, %v289, 0
  %366 = vmatpush.bf16.msra.mxu0 0
  %367 = vmatpush.bf16.msra.mxu0 0
  %368 = vmatpush.bf16.msra.mxu0 0
  %369 = vmatpush.bf16.msra.mxu0 0
  %370 = vmatpush.bf16.msra.mxu0 %v312
  %371 = vmatpush.bf16.msra.mxu0 %v311
  %372 = vmatpush.bf16.msra.mxu0 %v310
  %373 = vmatpush.bf16.msra.mxu0 %v309
  %374 = vmatmul.bf16.gmra.mxu0 %v319
  %v375 = vpop.f32.mrf.mxu0
  %v376 = vadd.f32 %v291, %v375
  %v377 = vpop.f32.mrf.mxu0
  %v378 = vadd.f32 %v291, %v377
  %379 = vmatmul.bf16.gmra.mxu0 %v322
  %v380 = vpop.f32.mrf.mxu0
  %v381 = vadd.f32 %v291, %v380
  %v382 = vpop.f32.mrf.mxu0
  %v383 = vadd.f32 %v291, %v382
  %384 = vmatmul.bf16.gmra.mxu0 %v325
  %v385 = vpop.f32.mrf.mxu0
  %v386 = vadd.f32 %v291, %v385
  %v387 = vpop.f32.mrf.mxu0
  %v388 = vadd.f32 %v291, %v387
  %389 = vmatmul.bf16.gmra.mxu0 %v328
  %v390 = vpop.f32.mrf.mxu0
  %v391 = vadd.f32 %v291, %v390
  %v392 = vpop.f32.mrf.mxu0
  %v393 = vadd.f32 %v291, %v392
  %394 = vmatmul.bf16.gmra.mxu0 %v331
  %v395 = vpop.f32.mrf.mxu0
  %v396 = vadd.f32 %v291, %v395
  %v397 = vpop.f32.mrf.mxu0
  %v398 = vadd.f32 %v291, %v397
  %399 = vmatmul.bf16.gmra.mxu0 %v334
  %v400 = vpop.f32.mrf.mxu0
  %v401 = vadd.f32 %v291, %v400
  %v402 = vpop.f32.mrf.mxu0
  %v403 = vadd.f32 %v291, %v402
  %404 = vmatmul.bf16.gmra.mxu0 %v337
  %v405 = vpop.f32.mrf.mxu0
  %v406 = vadd.f32 %v291, %v405
  %v407 = vpop.f32.mrf.mxu0
  %v408 = vadd.f32 %v291, %v407
  %409 = vmatmul.bf16.gmra.mxu0 %v340
  %v410 = vpop.f32.mrf.mxu0
  %v411 = vadd.f32 %v291, %v410
  %v412 = vpop.f32.mrf.mxu0
  %v413 = vadd.f32 %v291, %v412
  %414 = vmatmul.bf16.gmra.mxu0 %v343
  %v415 = vpop.f32.mrf.mxu0
  %v416 = vadd.f32 %v291, %v415
  %v417 = vpop.f32.mrf.mxu0
  %v418 = vadd.f32 %v291, %v417
  %419 = vmatmul.bf16.gmra.mxu0 %v346
  %v420 = vpop.f32.mrf.mxu0
  %v421 = vadd.f32 %v291, %v420
  %v422 = vpop.f32.mrf.mxu0
  %v423 = vadd.f32 %v291, %v422
  %424 = vmatmul.bf16.gmra.mxu0 %v349
  %v425 = vpop.f32.mrf.mxu0
  %v426 = vadd.f32 %v291, %v425
  %v427 = vpop.f32.mrf.mxu0
  %v428 = vadd.f32 %v291, %v427
  %429 = vmatmul.bf16.gmra.mxu0 %v352
  %v430 = vpop.f32.mrf.mxu0
  %v431 = vadd.f32 %v291, %v430
  %v432 = vpop.f32.mrf.mxu0
  %v433 = vadd.f32 %v291, %v432
  %434 = vmatmul.bf16.gmra.mxu0 %v355
  %v435 = vpop.f32.mrf.mxu0
  %v436 = vadd.f32 %v291, %v435
  %v437 = vpop.f32.mrf.mxu0
  %v438 = vadd.f32 %v291, %v437
  %439 = vmatmul.bf16.gmra.mxu0 %v358
  %v440 = vpop.f32.mrf.mxu0
  %v441 = vadd.f32 %v291, %v440
  %v442 = vpop.f32.mrf.mxu0
  %v443 = vadd.f32 %v291, %v442
  %444 = vmatmul.bf16.gmra.mxu0 %v361
  %v445 = vpop.f32.mrf.mxu0
  %v446 = vadd.f32 %v291, %v445
  %v447 = vpop.f32.mrf.mxu0
  %v448 = vadd.f32 %v291, %v447
  %449 = vmatmul.bf16.gmra.mxu0 %v364
  %v450 = vpop.f32.mrf.mxu0
  %v451 = vadd.f32 %v291, %v450
  %v452 = vpop.f32.mrf.mxu0
  %v453 = vadd.f32 %v291, %v452
  %454 = vdwg.mxu0
  %v455 = vtanh.pop %v376
  %v456 = vtanh.pop %v378
  %v457 = vtanh.pop %v381
  %v458 = vtanh.pop %v383
  %v459 = vtanh.pop %v386
  %v460 = vtanh.pop %v388
  %v461 = vtanh.pop %v391
  %v462 = vtanh.pop %v393
  %v463 = vtanh.pop %v396
  %v464 = vtanh.pop %v398
  %v465 = vtanh.pop %v401
  %v466 = vtanh.pop %v403
  %v467 = vtanh.pop %v406
  %v468 = vtanh.pop %v408
  %v469 = vtanh.pop %v411
  %v470 = vtanh.pop %v413
  %v471 = vtanh.pop %v416
  %v472 = vtanh.pop %v418
  %v473 = vtanh.pop %v421
  %v474 = vtanh.pop %v423
  %v475 = vtanh.pop %v426
  %v476 = vtanh.pop %v428
  %v477 = vtanh.pop %v431
  %v478 = vtanh.pop %v433
  %v479 = vtanh.pop %v436
  %v480 = vtanh.pop %v438
  %v481 = vtanh.pop %v441
  %v482 = vtanh.pop %v443
  %v483 = vtanh.pop %v446
  %v484 = vtanh.pop %v448
  %v485 = vtanh.pop %v451
  %v486 = vtanh.pop %v453
  %v487 = vld [vmem:[%s5] sm:$0xf]
  %v488 = vld [vmem:[%s5 + $0x4] sm:$0xf]
  %v489 = vld [vmem:[%s5 + $0x8] sm:$0xf]
  %v490 = vld [vmem:[%s5 + $0xc] sm:$0xf]
  %v491 = vld [vmem:[%s5 + $0x10] sm:$0xf]
  %v492 = vld [vmem:[%s5 + $0x14] sm:$0xf]
  %v493 = vld [vmem:[%s6] sm:$0x1]
  %v494 = vpack.c.bf16 %v456, %v455
  %v495 = vpack.c.bf16 %v458, %v457
  %v496 = vpack.c.bf16 %v460, %v459
  %v497 = vpack.c.bf16 %v462, %v461
  %v498 = vpack.c.bf16 %v464, %v463
  %v499 = vpack.c.bf16 %v466, %v465
  %v500 = vpack.c.bf16 %v468, %v467
  %v501 = vpack.c.bf16 %v470, %v469
  %v502 = vpack.c.bf16 %v472, %v471
  %v503 = vpack.c.bf16 %v474, %v473
  %v504 = vpack.c.bf16 %v476, %v475
  %v505 = vpack.c.bf16 %v478, %v477
  %v506 = vpack.c.bf16 %v480, %v479
  %v507 = vpack.c.bf16 %v482, %v481
  %v508 = vpack.c.bf16 %v484, %v483
  %v509 = vpack.c.bf16 %v486, %v485
  %v511 = vperm.slane %v493, 0
  %v519 = vunpack.c.l.b16 %v487
  %v520 = vunpack.c.l.b16 %v488
  %v521 = vunpack.c.l.b16 %v489
  %v522 = vunpack.c.l.b16 %v490
  %v523 = vunpack.c.l.b16 %v491
  %v524 = vunpack.c.l.b16 %v492
  %v525 = vpack.c.b16 %v520, %v519
  %v526 = vpack.c.b16 %v522, %v521
  %v527 = vpack.c.b16 %v524, %v523
  %vm531 = vcmask 392192
  %v533 = vsel %vm531, %v494, 0
  %v536 = vsel %vm531, %v495, 0
  %v539 = vsel %vm531, %v496, 0
  %v542 = vsel %vm531, %v497, 0
  %v545 = vsel %vm531, %v498, 0
  %v548 = vsel %vm531, %v499, 0
  %v551 = vsel %vm531, %v500, 0
  %v554 = vsel %vm531, %v501, 0
  %v557 = vsel %vm531, %v502, 0
  %v560 = vsel %vm531, %v503, 0
  %v563 = vsel %vm531, %v504, 0
  %v566 = vsel %vm531, %v505, 0
  %v569 = vsel %vm531, %v506, 0
  %v572 = vsel %vm531, %v507, 0
  %v575 = vsel %vm531, %v508, 0
  %v578 = vsel %vm531, %v509, 0
  %580 = vmatpush.bf16.msra.mxu0 0
  %581 = vmatpush.bf16.msra.mxu0 0
  %582 = vmatpush.bf16.msra.mxu0 0
  %583 = vmatpush.bf16.msra.mxu0 0
  %584 = vmatpush.bf16.msra.mxu0 0
  %585 = vmatpush.bf16.msra.mxu0 %v527
  %586 = vmatpush.bf16.msra.mxu0 %v526
  %587 = vmatpush.bf16.msra.mxu0 %v525
  %588 = vmatmul.bf16.gmra.mxu0 %v533
  %v589 = vpop.f32.mrf.mxu0
  %v590 = vadd.f32 %v511, %v589
  %v591 = vpop.f32.mrf.mxu0
  %v592 = vadd.f32 %v511, %v591
  %593 = vmatmul.bf16.gmra.mxu0 %v536
  %v594 = vpop.f32.mrf.mxu0
  %v595 = vadd.f32 %v511, %v594
  %v596 = vpop.f32.mrf.mxu0
  %v597 = vadd.f32 %v511, %v596
  %598 = vmatmul.bf16.gmra.mxu0 %v539
  %v599 = vpop.f32.mrf.mxu0
  %v600 = vadd.f32 %v511, %v599
  %v601 = vpop.f32.mrf.mxu0
  %v602 = vadd.f32 %v511, %v601
  %603 = vmatmul.bf16.gmra.mxu0 %v542
  %v604 = vpop.f32.mrf.mxu0
  %v605 = vadd.f32 %v511, %v604
  %v606 = vpop.f32.mrf.mxu0
  %v607 = vadd.f32 %v511, %v606
  %608 = vmatmul.bf16.gmra.mxu0 %v545
  %v609 = vpop.f32.mrf.mxu0
  %v610 = vadd.f32 %v511, %v609
  %v611 = vpop.f32.mrf.mxu0
  %v612 = vadd.f32 %v511, %v611
  %613 = vmatmul.bf16.gmra.mxu0 %v548
  %v614 = vpop.f32.mrf.mxu0
  %v615 = vadd.f32 %v511, %v614
  %v616 = vpop.f32.mrf.mxu0
  %v617 = vadd.f32 %v511, %v616
  %618 = vmatmul.bf16.gmra.mxu0 %v551
  %v619 = vpop.f32.mrf.mxu0
  %v620 = vadd.f32 %v511, %v619
  %v621 = vpop.f32.mrf.mxu0
  %v622 = vadd.f32 %v511, %v621
  %623 = vmatmul.bf16.gmra.mxu0 %v554
  %v624 = vpop.f32.mrf.mxu0
  %v625 = vadd.f32 %v511, %v624
  %v626 = vpop.f32.mrf.mxu0
  %v627 = vadd.f32 %v511, %v626
  %628 = vmatmul.bf16.gmra.mxu0 %v557
  %v629 = vpop.f32.mrf.mxu0
  %v630 = vadd.f32 %v511, %v629
  %v631 = vpop.f32.mrf.mxu0
  %v632 = vadd.f32 %v511, %v631
  %633 = vmatmul.bf16.gmra.mxu0 %v560
  %v634 = vpop.f32.mrf.mxu0
  %v635 = vadd.f32 %v511, %v634
  %v636 = vpop.f32.mrf.mxu0
  %v637 = vadd.f32 %v511, %v636
  %638 = vmatmul.bf16.gmra.mxu0 %v563
  %v639 = vpop.f32.mrf.mxu0
  %v640 = vadd.f32 %v511, %v639
  %v641 = vpop.f32.mrf.mxu0
  %v642 = vadd.f32 %v511, %v641
  %643 = vmatmul.bf16.gmra.mxu0 %v566
  %v644 = vpop.f32.mrf.mxu0
  %v645 = vadd.f32 %v511, %v644
  %v646 = vpop.f32.mrf.mxu0
  %v647 = vadd.f32 %v511, %v646
  %648 = vmatmul.bf16.gmra.mxu0 %v569
  %v649 = vpop.f32.mrf.mxu0
  %v650 = vadd.f32 %v511, %v649
  %v651 = vpop.f32.mrf.mxu0
  %v652 = vadd.f32 %v511, %v651
  %653 = vmatmul.bf16.gmra.mxu0 %v572
  %v654 = vpop.f32.mrf.mxu0
  %v655 = vadd.f32 %v511, %v654
  %v656 = vpop.f32.mrf.mxu0
  %v657 = vadd.f32 %v511, %v656
  %658 = vmatmul.bf16.gmra.mxu0 %v575
  %v659 = vpop.f32.mrf.mxu0
  %v660 = vadd.f32 %v511, %v659
  %v661 = vpop.f32.mrf.mxu0
  %v662 = vadd.f32 %v511, %v661
  %663 = vmatmul.bf16.gmra.mxu0 %v578
  %v664 = vpop.f32.mrf.mxu0
  %v665 = vadd.f32 %v511, %v664
  %v666 = vpop.f32.mrf.mxu0
  %v667 = vadd.f32 %v511, %v666
  %668 = vdwg.mxu0
  %vm669 = vcmask 130048
  %v670 = vsel %vm669, %v590, -inf
  %671 = vmax.xlane.f32.xlu0 %v670
  %v672 = vpop.xlane.xlu0 %671
  %v673 = vsel %vm669, %v592, -inf
  %674 = vmax.xlane.f32.xlu0 %v673
  %v675 = vpop.xlane.xlu0 %674
  %v676 = vsel %vm669, %v595, -inf
  %677 = vmax.xlane.f32.xlu0 %v676
  %v678 = vpop.xlane.xlu0 %677
  %v679 = vsel %vm669, %v597, -inf
  %680 = vmax.xlane.f32.xlu0 %v679
  %v681 = vpop.xlane.xlu0 %680
  %v682 = vsel %vm669, %v600, -inf
  %683 = vmax.xlane.f32.xlu0 %v682
  %v684 = vpop.xlane.xlu0 %683
  %v685 = vsel %vm669, %v602, -inf
  %686 = vmax.xlane.f32.xlu0 %v685
  %v687 = vpop.xlane.xlu0 %686
  %v688 = vsel %vm669, %v605, -inf
  %689 = vmax.xlane.f32.xlu0 %v688
  %v690 = vpop.xlane.xlu0 %689
  %v691 = vsel %vm669, %v607, -inf
  %692 = vmax.xlane.f32.xlu0 %v691
  %v693 = vpop.xlane.xlu0 %692
  %v694 = vsel %vm669, %v610, -inf
  %695 = vmax.xlane.f32.xlu0 %v694
  %v696 = vpop.xlane.xlu0 %695
  %v697 = vsel %vm669, %v612, -inf
  %698 = vmax.xlane.f32.xlu0 %v697
  %v699 = vpop.xlane.xlu0 %698
  %v700 = vsel %vm669, %v615, -inf
  %701 = vmax.xlane.f32.xlu0 %v700
  %v702 = vpop.xlane.xlu0 %701
  %v703 = vsel %vm669, %v617, -inf
  %704 = vmax.xlane.f32.xlu0 %v703
  %v705 = vpop.xlane.xlu0 %704
  %v706 = vsel %vm669, %v620, -inf
  %707 = vmax.xlane.f32.xlu0 %v706
  %v708 = vpop.xlane.xlu0 %707
  %v709 = vsel %vm669, %v622, -inf
  %710 = vmax.xlane.f32.xlu0 %v709
  %v711 = vpop.xlane.xlu0 %710
  %v712 = vsel %vm669, %v625, -inf
  %713 = vmax.xlane.f32.xlu0 %v712
  %v714 = vpop.xlane.xlu0 %713
  %v715 = vsel %vm669, %v627, -inf
  %716 = vmax.xlane.f32.xlu0 %v715
  %v717 = vpop.xlane.xlu0 %716
  %v718 = vsel %vm669, %v630, -inf
  %719 = vmax.xlane.f32.xlu0 %v718
  %v720 = vpop.xlane.xlu0 %719
  %v721 = vsel %vm669, %v632, -inf
  %722 = vmax.xlane.f32.xlu0 %v721
  %v723 = vpop.xlane.xlu0 %722
  %v724 = vsel %vm669, %v635, -inf
  %725 = vmax.xlane.f32.xlu0 %v724
  %v726 = vpop.xlane.xlu0 %725
  %v727 = vsel %vm669, %v637, -inf
  %728 = vmax.xlane.f32.xlu0 %v727
  %v729 = vpop.xlane.xlu0 %728
  %v730 = vsel %vm669, %v640, -inf
  %731 = vmax.xlane.f32.xlu0 %v730
  %v732 = vpop.xlane.xlu0 %731
  %v733 = vsel %vm669, %v642, -inf
  %734 = vmax.xlane.f32.xlu0 %v733
  %v735 = vpop.xlane.xlu0 %734
  %v736 = vsel %vm669, %v645, -inf
  %737 = vmax.xlane.f32.xlu0 %v736
  %v738 = vpop.xlane.xlu0 %737
  %v739 = vsel %vm669, %v647, -inf
  %740 = vmax.xlane.f32.xlu0 %v739
  %v741 = vpop.xlane.xlu0 %740
  %v742 = vsel %vm669, %v650, -inf
  %743 = vmax.xlane.f32.xlu0 %v742
  %v744 = vpop.xlane.xlu0 %743
  %v745 = vsel %vm669, %v652, -inf
  %746 = vmax.xlane.f32.xlu0 %v745
  %v747 = vpop.xlane.xlu0 %746
  %v748 = vsel %vm669, %v655, -inf
  %749 = vmax.xlane.f32.xlu0 %v748
  %v750 = vpop.xlane.xlu0 %749
  %v751 = vsel %vm669, %v657, -inf
  %752 = vmax.xlane.f32.xlu0 %v751
  %v753 = vpop.xlane.xlu0 %752
  %v754 = vsel %vm669, %v660, -inf
  %755 = vmax.xlane.f32.xlu0 %v754
  %v756 = vpop.xlane.xlu0 %755
  %v757 = vsel %vm669, %v662, -inf
  %758 = vmax.xlane.f32.xlu0 %v757
  %v759 = vpop.xlane.xlu0 %758
  %v760 = vsel %vm669, %v665, -inf
  %761 = vmax.xlane.f32.xlu0 %v760
  %v762 = vpop.xlane.xlu0 %761
  %v763 = vsel %vm669, %v667, -inf
  %764 = vmax.xlane.f32.xlu0 %v763
  %v765 = vpop.xlane.xlu0 %764
  %v766 = vsub.f32 %v590, %v672
  %v767 = vsub.f32 %v592, %v675
  %v768 = vsub.f32 %v595, %v678
  %v769 = vsub.f32 %v597, %v681
  %v770 = vsub.f32 %v600, %v684
  %v771 = vsub.f32 %v602, %v687
  %v772 = vsub.f32 %v605, %v690
  %v773 = vsub.f32 %v607, %v693
  %v774 = vsub.f32 %v610, %v696
  %v775 = vsub.f32 %v612, %v699
  %v776 = vsub.f32 %v615, %v702
  %v777 = vsub.f32 %v617, %v705
  %v778 = vsub.f32 %v620, %v708
  %v779 = vsub.f32 %v622, %v711
  %v780 = vsub.f32 %v625, %v714
  %v781 = vsub.f32 %v627, %v717
  %v782 = vsub.f32 %v630, %v720
  %v783 = vsub.f32 %v632, %v723
  %v784 = vsub.f32 %v635, %v726
  %v785 = vsub.f32 %v637, %v729
  %v786 = vsub.f32 %v640, %v732
  %v787 = vsub.f32 %v642, %v735
  %v788 = vsub.f32 %v645, %v738
  %v789 = vsub.f32 %v647, %v741
  %v790 = vsub.f32 %v650, %v744
  %v791 = vsub.f32 %v652, %v747
  %v792 = vsub.f32 %v655, %v750
  %v793 = vsub.f32 %v657, %v753
  %v794 = vsub.f32 %v660, %v756
  %v795 = vsub.f32 %v662, %v759
  %v796 = vsub.f32 %v665, %v762
  %v797 = vsub.f32 %v667, %v765
  %v798 = vmul.f32 %v766, 1.442695
  %v799 = vpow.pop %v798
  %v800 = vmul.f32 %v767, 1.442695
  %v801 = vpow.pop %v800
  %v802 = vmul.f32 %v768, 1.442695
  %v803 = vpow.pop %v802
  %v804 = vmul.f32 %v769, 1.442695
  %v805 = vpow.pop %v804
  %v806 = vmul.f32 %v770, 1.442695
  %v807 = vpow.pop %v806
  %v808 = vmul.f32 %v771, 1.442695
  %v809 = vpow.pop %v808
  %v810 = vmul.f32 %v772, 1.442695
  %v811 = vpow.pop %v810
  %v812 = vmul.f32 %v773, 1.442695
  %v813 = vpow.pop %v812
  %v814 = vmul.f32 %v774, 1.442695
  %v815 = vpow.pop %v814
  %v816 = vmul.f32 %v775, 1.442695
  %v817 = vpow.pop %v816
  %v818 = vmul.f32 %v776, 1.442695
  %v819 = vpow.pop %v818
  %v820 = vmul.f32 %v777, 1.442695
  %v821 = vpow.pop %v820
  %v822 = vmul.f32 %v778, 1.442695
  %v823 = vpow.pop %v822
  %v824 = vmul.f32 %v779, 1.442695
  %v825 = vpow.pop %v824
  %v826 = vmul.f32 %v780, 1.442695
  %v827 = vpow.pop %v826
  %v828 = vmul.f32 %v781, 1.442695
  %v829 = vpow.pop %v828
  %v830 = vmul.f32 %v782, 1.442695
  %v831 = vpow.pop %v830
  %v832 = vmul.f32 %v783, 1.442695
  %v833 = vpow.pop %v832
  %v834 = vmul.f32 %v784, 1.442695
  %v835 = vpow.pop %v834
  %v836 = vmul.f32 %v785, 1.442695
  %v837 = vpow.pop %v836
  %v838 = vmul.f32 %v786, 1.442695
  %v839 = vpow.pop %v838
  %v840 = vmul.f32 %v787, 1.442695
  %v841 = vpow.pop %v840
  %v842 = vmul.f32 %v788, 1.442695
  %v843 = vpow.pop %v842
  %v844 = vmul.f32 %v789, 1.442695
  %v845 = vpow.pop %v844
  %v846 = vmul.f32 %v790, 1.442695
  %v847 = vpow.pop %v846
  %v848 = vmul.f32 %v791, 1.442695
  %v849 = vpow.pop %v848
  %v850 = vmul.f32 %v792, 1.442695
  %v851 = vpow.pop %v850
  %v852 = vmul.f32 %v793, 1.442695
  %v853 = vpow.pop %v852
  %v854 = vmul.f32 %v794, 1.442695
  %v855 = vpow.pop %v854
  %v856 = vmul.f32 %v795, 1.442695
  %v857 = vpow.pop %v856
  %v858 = vmul.f32 %v796, 1.442695
  %v859 = vpow.pop %v858
  %v860 = vmul.f32 %v797, 1.442695
  %v861 = vpow.pop %v860
  %v862 = vsel %vm669, %v799, 0.0
  %863 = vadd.xlane.f32.xlu0 %v862
  %v864 = vpop.xlane.xlu0 %863
  %v865 = vsel %vm669, %v801, 0.0
  %866 = vadd.xlane.f32.xlu0 %v865
  %v867 = vpop.xlane.xlu0 %866
  %v868 = vsel %vm669, %v803, 0.0
  %869 = vadd.xlane.f32.xlu0 %v868
  %v870 = vpop.xlane.xlu0 %869
  %v871 = vsel %vm669, %v805, 0.0
  %872 = vadd.xlane.f32.xlu0 %v871
  %v873 = vpop.xlane.xlu0 %872
  %v874 = vsel %vm669, %v807, 0.0
  %875 = vadd.xlane.f32.xlu0 %v874
  %v876 = vpop.xlane.xlu0 %875
  %v877 = vsel %vm669, %v809, 0.0
  %878 = vadd.xlane.f32.xlu0 %v877
  %v879 = vpop.xlane.xlu0 %878
  %v880 = vsel %vm669, %v811, 0.0
  %881 = vadd.xlane.f32.xlu0 %v880
  %v882 = vpop.xlane.xlu0 %881
  %v883 = vsel %vm669, %v813, 0.0
  %884 = vadd.xlane.f32.xlu0 %v883
  %v885 = vpop.xlane.xlu0 %884
  %v886 = vsel %vm669, %v815, 0.0
  %887 = vadd.xlane.f32.xlu0 %v886
  %v888 = vpop.xlane.xlu0 %887
  %v889 = vsel %vm669, %v817, 0.0
  %890 = vadd.xlane.f32.xlu0 %v889
  %v891 = vpop.xlane.xlu0 %890
  %v892 = vsel %vm669, %v819, 0.0
  %893 = vadd.xlane.f32.xlu0 %v892
  %v894 = vpop.xlane.xlu0 %893
  %v895 = vsel %vm669, %v821, 0.0
  %896 = vadd.xlane.f32.xlu0 %v895
  %v897 = vpop.xlane.xlu0 %896
  %v898 = vsel %vm669, %v823, 0.0
  %899 = vadd.xlane.f32.xlu0 %v898
  %v900 = vpop.xlane.xlu0 %899
  %v901 = vsel %vm669, %v825, 0.0
  %902 = vadd.xlane.f32.xlu0 %v901
  %v903 = vpop.xlane.xlu0 %902
  %v904 = vsel %vm669, %v827, 0.0
  %905 = vadd.xlane.f32.xlu0 %v904
  %v906 = vpop.xlane.xlu0 %905
  %v907 = vsel %vm669, %v829, 0.0
  %908 = vadd.xlane.f32.xlu0 %v907
  %v909 = vpop.xlane.xlu0 %908
  %v910 = vsel %vm669, %v831, 0.0
  %911 = vadd.xlane.f32.xlu0 %v910
  %v912 = vpop.xlane.xlu0 %911
  %v913 = vsel %vm669, %v833, 0.0
  %914 = vadd.xlane.f32.xlu0 %v913
  %v915 = vpop.xlane.xlu0 %914
  %v916 = vsel %vm669, %v835, 0.0
  %917 = vadd.xlane.f32.xlu0 %v916
  %v918 = vpop.xlane.xlu0 %917
  %v919 = vsel %vm669, %v837, 0.0
  %920 = vadd.xlane.f32.xlu0 %v919
  %v921 = vpop.xlane.xlu0 %920
  %v922 = vsel %vm669, %v839, 0.0
  %923 = vadd.xlane.f32.xlu0 %v922
  %v924 = vpop.xlane.xlu0 %923
  %v925 = vsel %vm669, %v841, 0.0
  %926 = vadd.xlane.f32.xlu0 %v925
  %v927 = vpop.xlane.xlu0 %926
  %v928 = vsel %vm669, %v843, 0.0
  %929 = vadd.xlane.f32.xlu0 %v928
  %v930 = vpop.xlane.xlu0 %929
  %v931 = vsel %vm669, %v845, 0.0
  %932 = vadd.xlane.f32.xlu0 %v931
  %v933 = vpop.xlane.xlu0 %932
  %v934 = vsel %vm669, %v847, 0.0
  %935 = vadd.xlane.f32.xlu0 %v934
  %v936 = vpop.xlane.xlu0 %935
  %v937 = vsel %vm669, %v849, 0.0
  %938 = vadd.xlane.f32.xlu0 %v937
  %v939 = vpop.xlane.xlu0 %938
  %v940 = vsel %vm669, %v851, 0.0
  %941 = vadd.xlane.f32.xlu0 %v940
  %v942 = vpop.xlane.xlu0 %941
  %v943 = vsel %vm669, %v853, 0.0
  %944 = vadd.xlane.f32.xlu0 %v943
  %v945 = vpop.xlane.xlu0 %944
  %v946 = vsel %vm669, %v855, 0.0
  %947 = vadd.xlane.f32.xlu0 %v946
  %v948 = vpop.xlane.xlu0 %947
  %v949 = vsel %vm669, %v857, 0.0
  %950 = vadd.xlane.f32.xlu0 %v949
  %v951 = vpop.xlane.xlu0 %950
  %v952 = vsel %vm669, %v859, 0.0
  %953 = vadd.xlane.f32.xlu0 %v952
  %v954 = vpop.xlane.xlu0 %953
  %v955 = vsel %vm669, %v861, 0.0
  %956 = vadd.xlane.f32.xlu0 %v955
  %v957 = vpop.xlane.xlu0 %956
  %v958 = vrcp.pop %v864
  %v959 = vrcp.pop %v867
  %v960 = vrcp.pop %v870
  %v961 = vrcp.pop %v873
  %v962 = vrcp.pop %v876
  %v963 = vrcp.pop %v879
  %v964 = vrcp.pop %v882
  %v965 = vrcp.pop %v885
  %v966 = vrcp.pop %v888
  %v967 = vrcp.pop %v891
  %v968 = vrcp.pop %v894
  %v969 = vrcp.pop %v897
  %v970 = vrcp.pop %v900
  %v971 = vrcp.pop %v903
  %v972 = vrcp.pop %v906
  %v973 = vrcp.pop %v909
  %v974 = vrcp.pop %v912
  %v975 = vrcp.pop %v915
  %v976 = vrcp.pop %v918
  %v977 = vrcp.pop %v921
  %v978 = vrcp.pop %v924
  %v979 = vrcp.pop %v927
  %v980 = vrcp.pop %v930
  %v981 = vrcp.pop %v933
  %v982 = vrcp.pop %v936
  %v983 = vrcp.pop %v939
  %v984 = vrcp.pop %v942
  %v985 = vrcp.pop %v945
  %v986 = vrcp.pop %v948
  %v987 = vrcp.pop %v951
  %v988 = vrcp.pop %v954
  %v989 = vrcp.pop %v957
  %v990 = vmul.f32 %v864, %v958
  %v991 = vmul.f32 %v867, %v959
  %v992 = vmul.f32 %v870, %v960
  %v993 = vmul.f32 %v873, %v961
  %v994 = vmul.f32 %v876, %v962
  %v995 = vmul.f32 %v879, %v963
  %v996 = vmul.f32 %v882, %v964
  %v997 = vmul.f32 %v885, %v965
  %v998 = vmul.f32 %v888, %v966
  %v999 = vmul.f32 %v891, %v967
  %v1000 = vmul.f32 %v894, %v968
  %v1001 = vmul.f32 %v897, %v969
  %v1002 = vmul.f32 %v900, %v970
  %v1003 = vmul.f32 %v903, %v971
  %v1004 = vmul.f32 %v906, %v972
  %v1005 = vmul.f32 %v909, %v973
  %v1006 = vmul.f32 %v912, %v974
  %v1007 = vmul.f32 %v915, %v975
  %v1008 = vmul.f32 %v918, %v976
  %v1009 = vmul.f32 %v921, %v977
  %v1010 = vmul.f32 %v924, %v978
  %v1011 = vmul.f32 %v927, %v979
  %v1012 = vmul.f32 %v930, %v980
  %v1013 = vmul.f32 %v933, %v981
  %v1014 = vmul.f32 %v936, %v982
  %v1015 = vmul.f32 %v939, %v983
  %v1016 = vmul.f32 %v942, %v984
  %v1017 = vmul.f32 %v945, %v985
  %v1018 = vmul.f32 %v948, %v986
  %v1019 = vmul.f32 %v951, %v987
  %v1020 = vmul.f32 %v954, %v988
  %v1021 = vmul.f32 %v957, %v989
  %v1022 = vsub.f32 2.0, %v990
  %v1023 = vsub.f32 2.0, %v991
  %v1024 = vsub.f32 2.0, %v992
  %v1025 = vsub.f32 2.0, %v993
  %v1026 = vsub.f32 2.0, %v994
  %v1027 = vsub.f32 2.0, %v995
  %v1028 = vsub.f32 2.0, %v996
  %v1029 = vsub.f32 2.0, %v997
  %v1030 = vsub.f32 2.0, %v998
  %v1031 = vsub.f32 2.0, %v999
  %v1032 = vsub.f32 2.0, %v1000
  %v1033 = vsub.f32 2.0, %v1001
  %v1034 = vsub.f32 2.0, %v1002
  %v1035 = vsub.f32 2.0, %v1003
  %v1036 = vsub.f32 2.0, %v1004
  %v1037 = vsub.f32 2.0, %v1005
  %v1038 = vsub.f32 2.0, %v1006
  %v1039 = vsub.f32 2.0, %v1007
  %v1040 = vsub.f32 2.0, %v1008
  %v1041 = vsub.f32 2.0, %v1009
  %v1042 = vsub.f32 2.0, %v1010
  %v1043 = vsub.f32 2.0, %v1011
  %v1044 = vsub.f32 2.0, %v1012
  %v1045 = vsub.f32 2.0, %v1013
  %v1046 = vsub.f32 2.0, %v1014
  %v1047 = vsub.f32 2.0, %v1015
  %v1048 = vsub.f32 2.0, %v1016
  %v1049 = vsub.f32 2.0, %v1017
  %v1050 = vsub.f32 2.0, %v1018
  %v1051 = vsub.f32 2.0, %v1019
  %v1052 = vsub.f32 2.0, %v1020
  %v1053 = vsub.f32 2.0, %v1021
  %v1054 = vmul.f32 %v958, %v1022
  %v1055 = vmul.f32 %v959, %v1023
  %v1056 = vmul.f32 %v960, %v1024
  %v1057 = vmul.f32 %v961, %v1025
  %v1058 = vmul.f32 %v962, %v1026
  %v1059 = vmul.f32 %v963, %v1027
  %v1060 = vmul.f32 %v964, %v1028
  %v1061 = vmul.f32 %v965, %v1029
  %v1062 = vmul.f32 %v966, %v1030
  %v1063 = vmul.f32 %v967, %v1031
  %v1064 = vmul.f32 %v968, %v1032
  %v1065 = vmul.f32 %v969, %v1033
  %v1066 = vmul.f32 %v970, %v1034
  %v1067 = vmul.f32 %v971, %v1035
  %v1068 = vmul.f32 %v972, %v1036
  %v1069 = vmul.f32 %v973, %v1037
  %v1070 = vmul.f32 %v974, %v1038
  %v1071 = vmul.f32 %v975, %v1039
  %v1072 = vmul.f32 %v976, %v1040
  %v1073 = vmul.f32 %v977, %v1041
  %v1074 = vmul.f32 %v978, %v1042
  %v1075 = vmul.f32 %v979, %v1043
  %v1076 = vmul.f32 %v980, %v1044
  %v1077 = vmul.f32 %v981, %v1045
  %v1078 = vmul.f32 %v982, %v1046
  %v1079 = vmul.f32 %v983, %v1047
  %v1080 = vmul.f32 %v984, %v1048
  %v1081 = vmul.f32 %v985, %v1049
  %v1082 = vmul.f32 %v986, %v1050
  %v1083 = vmul.f32 %v987, %v1051
  %v1084 = vmul.f32 %v988, %v1052
  %v1085 = vmul.f32 %v989, %v1053
  %v1086 = vmul.f32 %v799, %v1054
  %v1087 = vmul.f32 %v801, %v1055
  %v1088 = vmul.f32 %v803, %v1056
  %v1089 = vmul.f32 %v805, %v1057
  %v1090 = vmul.f32 %v807, %v1058
  %v1091 = vmul.f32 %v809, %v1059
  %v1092 = vmul.f32 %v811, %v1060
  %v1093 = vmul.f32 %v813, %v1061
  %v1094 = vmul.f32 %v815, %v1062
  %v1095 = vmul.f32 %v817, %v1063
  %v1096 = vmul.f32 %v819, %v1064
  %v1097 = vmul.f32 %v821, %v1065
  %v1098 = vmul.f32 %v823, %v1066
  %v1099 = vmul.f32 %v825, %v1067
  %v1100 = vmul.f32 %v827, %v1068
  %v1101 = vmul.f32 %v829, %v1069
  %v1102 = vmul.f32 %v831, %v1070
  %v1103 = vmul.f32 %v833, %v1071
  %v1104 = vmul.f32 %v835, %v1072
  %v1105 = vmul.f32 %v837, %v1073
  %v1106 = vmul.f32 %v839, %v1074
  %v1107 = vmul.f32 %v841, %v1075
  %v1108 = vmul.f32 %v843, %v1076
  %v1109 = vmul.f32 %v845, %v1077
  %v1110 = vmul.f32 %v847, %v1078
  %v1111 = vmul.f32 %v849, %v1079
  %v1112 = vmul.f32 %v851, %v1080
  %v1113 = vmul.f32 %v853, %v1081
  %v1114 = vmul.f32 %v855, %v1082
  %v1115 = vmul.f32 %v857, %v1083
  %v1116 = vmul.f32 %v859, %v1084
  %v1117 = vmul.f32 %v861, %v1085
  %1118 = vst.msk [vmem:[%s7] sm:$0xff] %vm669, %v1086
  %1119 = vst.msk [vmem:[%s7 + $0x8] sm:$0xff] %vm669, %v1087
  %1120 = vst.msk [vmem:[%s7 + $0x10] sm:$0xff] %vm669, %v1088
  %1121 = vst.msk [vmem:[%s7 + $0x18] sm:$0xff] %vm669, %v1089
  %1122 = vst.msk [vmem:[%s7 + $0x20] sm:$0xff] %vm669, %v1090
  %1123 = vst.msk [vmem:[%s7 + $0x28] sm:$0xff] %vm669, %v1091
  %1124 = vst.msk [vmem:[%s7 + $0x30] sm:$0xff] %vm669, %v1092
  %1125 = vst.msk [vmem:[%s7 + $0x38] sm:$0xff] %vm669, %v1093
  %1126 = vst.msk [vmem:[%s7 + $0x40] sm:$0xff] %vm669, %v1094
  %1127 = vst.msk [vmem:[%s7 + $0x48] sm:$0xff] %vm669, %v1095
  %1128 = vst.msk [vmem:[%s7 + $0x50] sm:$0xff] %vm669, %v1096
  %1129 = vst.msk [vmem:[%s7 + $0x58] sm:$0xff] %vm669, %v1097
  %1130 = vst.msk [vmem:[%s7 + $0x60] sm:$0xff] %vm669, %v1098
  %1131 = vst.msk [vmem:[%s7 + $0x68] sm:$0xff] %vm669, %v1099
  %1132 = vst.msk [vmem:[%s7 + $0x70] sm:$0xff] %vm669, %v1100
  %1133 = vst.msk [vmem:[%s7 + $0x78] sm:$0xff] %vm669, %v1101
  %1134 = vst.msk [vmem:[%s7 + $0x80] sm:$0xff] %vm669, %v1102
  %1135 = vst.msk [vmem:[%s7 + $0x88] sm:$0xff] %vm669, %v1103
  %1136 = vst.msk [vmem:[%s7 + $0x90] sm:$0xff] %vm669, %v1104
  %1137 = vst.msk [vmem:[%s7 + $0x98] sm:$0xff] %vm669, %v1105
  %1138 = vst.msk [vmem:[%s7 + $0xa0] sm:$0xff] %vm669, %v1106
  %1139 = vst.msk [vmem:[%s7 + $0xa8] sm:$0xff] %vm669, %v1107
  %1140 = vst.msk [vmem:[%s7 + $0xb0] sm:$0xff] %vm669, %v1108
  %1141 = vst.msk [vmem:[%s7 + $0xb8] sm:$0xff] %vm669, %v1109
  %1142 = vst.msk [vmem:[%s7 + $0xc0] sm:$0xff] %vm669, %v1110
  %1143 = vst.msk [vmem:[%s7 + $0xc8] sm:$0xff] %vm669, %v1111
  %1144 = vst.msk [vmem:[%s7 + $0xd0] sm:$0xff] %vm669, %v1112
  %1145 = vst.msk [vmem:[%s7 + $0xd8] sm:$0xff] %vm669, %v1113
  %1146 = vst.msk [vmem:[%s7 + $0xe0] sm:$0xff] %vm669, %v1114
  %1147 = vst.msk [vmem:[%s7 + $0xe8] sm:$0xff] %vm669, %v1115
  %1148 = vst.msk [vmem:[%s7 + $0xf0] sm:$0xff] %vm669, %v1116
  %1149 = vst.msk [vmem:[%s7 + $0xf8] sm:$0xff] %vm669, %v1117
  // Predicated region
  $region30: #{mlp_forward.1} parent=0 // pred_check
    _
  $region31: #{mlp_forward.1} parent=0 // pred_check_branch
    %1151 = sbr.rel (0) target = $region33
  $region32: #{mlp_forward.1} parent=0 // pred_region
    _
  $region33: #{mlp_forward.1} parent=0 // pred_fallthru
    _
  // Predicated region
  $region34: #{mlp_forward.1} parent=0 // pred_check
    _
  $region35: #{mlp_forward.1} parent=0 // pred_check_branch
    %1153 = sbr.rel (0) target = $region37
  $region36: #{mlp_forward.1} parent=0 // pred_region
    _
  $region37: #{mlp_forward.1} parent=0 // pred_fallthru
    _

</llo_original>
